<compile_context>
chip_gen: v5e
topology: v5e:2x2
jax: 0.10.0
libtpu: 0.0.40
codegen_flags: <defaults>
</compile_context>

<pallas_src>
import jax
import jax.numpy as jnp
from jax.experimental import pallas as pl
from jax.experimental.pallas import tpu as pltpu


def _mlp_kernel(x_ref, w1_ref, b1_ref, w2_ref, b2_ref, w3_ref, b3_ref, o_ref):
    # Cast x on the VPU inside the kernel (kernel is DMA-bound, so the cast is
    # free; avoids a separate wrapper-side astype pass over HBM).
    x = x_ref[...].astype(w1_ref.dtype)

    # Layer 1 + LeakyReLU(0.2)  (MXU accumulates in f32; f32 epilogue)
    h = jnp.dot(x, w1_ref[...], preferred_element_type=jnp.float32)
    h = h + b1_ref[...]
    h = jnp.where(h > 0, h, 0.2 * h)

    # Layer 2 + Dropout(0.8) [identity in eval mode] + LeakyReLU(0.2)
    h = jnp.dot(h.astype(w2_ref.dtype), w2_ref[...],
                preferred_element_type=jnp.float32)
    h = h + b2_ref[...]
    h = jnp.where(h > 0, h, 0.2 * h)

    # Layer 3 (no activation): lane-dense N=128 dot, then slice the live
    # out_dim columns so only (tm, out_dim) is written back to HBM.
    out = jnp.dot(h.astype(w3_ref.dtype), w3_ref[...],
                  preferred_element_type=jnp.float32)
    out_dim = o_ref.shape[-1]
    o_ref[...] = (out[:, :out_dim] + b3_ref[...]).astype(o_ref.dtype)


def _round_up(n, m):
    return ((n + m - 1) // m) * m


def x2nn_forward(x, params, *, compute_dtype=jnp.bfloat16, block_m=8192):
    """x: (..., inputsize).  params: dict of W1,b1,W2,b2,W3,b3 (W as (in,out))."""
    w1, b1 = params["W1"], params["b1"]
    w2, b2 = params["W2"], params["b2"]
    w3, b3 = params["W3"], params["b3"]

    lead_shape = x.shape[:-1]
    in_dim = x.shape[-1]
    hidden = w1.shape[1]
    out_dim = w3.shape[1]

    x2d = x.reshape(-1, in_dim)          # stays f32; cast happens in-kernel
    m = x2d.shape[0]

    # Lane-dense feature padding for the MXU dots (hidden 100 -> 128, etc.).
    hp = _round_up(hidden, 128)
    op = _round_up(out_dim, 128)

    def pad2(a, rows, cols):
        return jnp.pad(a, ((0, rows - a.shape[0]), (0, cols - a.shape[1])))

    w1p = pad2(w1, in_dim, hp).astype(compute_dtype)
    w2p = pad2(w2, hp, hp).astype(compute_dtype)
    w3p = pad2(w3, hp, op).astype(compute_dtype)
    # Biases kept f32 and 2D (1, F).  b1/b2 padded entries are exactly zero
    # (exact through bias + LeakyReLU); b3 stays unpadded since the kernel
    # slices the last dot's result before the bias add / store.
    b1p = jnp.pad(b1, (0, hp - hidden)).reshape(1, hp).astype(jnp.float32)
    b2p = jnp.pad(b2, (0, hp - hidden)).reshape(1, hp).astype(jnp.float32)
    b3p = b3.reshape(1, out_dim).astype(jnp.float32)

    # Row tile: multiple of 16 (bf16 sublane packing), capped so the grid has
    # >= 2 steps when possible (v7x dual TensorCore via "parallel" semantics),
    # and never larger than block_m.
    tm = min(block_m, max(16, _round_up(pl.cdiv(m, 2), 16)))
    grid = (pl.cdiv(m, tm),)

    const2d = lambda shape: pl.BlockSpec(shape, lambda i: (0, 0))

    flops = 2 * m * (in_dim * hp + hp * hp + hp * op)
    bytes_accessed = (
        x2d.size * x2d.dtype.itemsize
        + m * out_dim * jnp.dtype(x.dtype).itemsize
        + sum(int(a.size) * a.dtype.itemsize
              for a in (w1p, w2p, w3p, b1p, b2p, b3p)))

    out2d = pl.pallas_call(
        _mlp_kernel,
        out_shape=jax.ShapeDtypeStruct((m, out_dim), x.dtype),
        grid=grid,
        in_specs=[
            pl.BlockSpec((tm, in_dim), lambda i: (i, 0)),
            const2d(w1p.shape), const2d(b1p.shape),
            const2d(w2p.shape), const2d(b2p.shape),
            const2d(w3p.shape), const2d(b3p.shape),
        ],
        out_specs=pl.BlockSpec((tm, out_dim), lambda i: (i, 0)),
        compiler_params=pltpu.CompilerParams(
            dimension_semantics=("parallel",),
            vmem_limit_bytes=48 * 1024 * 1024,
        ),
        cost_estimate=pl.CostEstimate(
            flops=flops, transcendentals=0, bytes_accessed=bytes_accessed),
    )(x2d, w1p, b1p, w2p, b2p, w3p, b3p)

    return out2d.reshape(*lead_shape, out_dim)


def init_params(key, inputsize, outputsize, hidden=100):
    """Deterministic init mimicking PyTorch Linear's U(-1/sqrt(fan_in), 1/sqrt(fan_in))."""
    ks = jax.random.split(key, 6)

    def lin(kw, kb, fan_in, fan_out):
        bound = 1.0 / jnp.sqrt(jnp.float32(fan_in))
        w = jax.random.uniform(kw, (fan_in, fan_out), jnp.float32, -bound, bound)
        b = jax.random.uniform(kb, (fan_out,), jnp.float32, -bound, bound)
        return w, b

    w1, b1 = lin(ks[0], ks[1], inputsize, hidden)
    w2, b2 = lin(ks[2], ks[3], hidden, hidden)
    w3, b3 = lin(ks[4], ks[5], hidden, outputsize)
    return {"W1": w1, "b1": b1, "W2": w2, "b2": b2, "W3": w3, "b3": b3}


def _ref(x, p):
    h = x @ p["W1"] + p["b1"]
    h = jnp.where(h > 0, h, 0.2 * h)
    h = h @ p["W2"] + p["b2"]
    h = jnp.where(h > 0, h, 0.2 * h)
    return h @ p["W3"] + p["b3"]


if __name__ == "__main__":
    inputsize, outputsize = 36, 36  # module example input is torch.rand(1, 1, 36)

    key = jax.random.PRNGKey(0)
    pkey, xkey, bkey = jax.random.split(key, 3)
    params = init_params(pkey, inputsize, outputsize)

    # 1) Module-shaped input (like torch.rand(1, 1, 36), batch=2) — exact f32 path.
    x_small = jax.random.uniform(xkey, (2, 1, inputsize), jnp.float32)
    out_small = x2nn_forward(x_small, params, compute_dtype=jnp.float32)
    out_small = jax.block_until_ready(out_small)
    exp_small = _ref(x_small, params)
    assert out_small.shape == (2, 1, outputsize)
    assert jnp.allclose(out_small, exp_small, atol=1e-4, rtol=1e-4)

    # 2) Larger batch: default block_m path -> tm=160, grid of 2 steps with a
    #    partial tail tile; bf16 MXU operands with in-kernel x cast.
    x_big = jax.random.uniform(bkey, (300, inputsize), jnp.float32)
    out_big = x2nn_forward(x_big, params, compute_dtype=jnp.bfloat16)
    out_big = jax.block_until_ready(out_big)
    exp_big = _ref(x_big, params)
    assert out_big.shape == (300, outputsize)
    assert jnp.allclose(out_big, exp_big, atol=5e-2, rtol=5e-2)

    # 3) Explicit small block_m to exercise a >2-step grid with tail.
    out_big2 = x2nn_forward(x_big, params, compute_dtype=jnp.bfloat16,
                            block_m=128)
    out_big2 = jax.block_until_ready(out_big2)
    assert jnp.allclose(out_big2, exp_big, atol=5e-2, rtol=5e-2)

    print("KERNEL_OK")
</pallas_src>

<mosaic_0001>
module attributes {stable_mosaic.version = 11 : i64} {
  func.func @_mlp_kernel(%arg0: i32, %arg1: memref<16x36xf32, #tpu.memory_space<vmem>>, %arg2: memref<36x128xf32, #tpu.memory_space<vmem>>, %arg3: memref<1x128xf32, #tpu.memory_space<vmem>>, %arg4: memref<128x128xf32, #tpu.memory_space<vmem>>, %arg5: memref<1x128xf32, #tpu.memory_space<vmem>>, %arg6: memref<128x128xf32, #tpu.memory_space<vmem>>, %arg7: memref<1x36xf32, #tpu.memory_space<vmem>>, %arg8: memref<16x36xf32, #tpu.memory_space<vmem>>) attributes {dimension_semantics = [#tpu.dimension_semantics<parallel>], iteration_bounds = array<i64: 1>, scalar_prefetch = 0 : i64, scratch_operands = 0 : i64, tpu.core_type = #tpu.core_type<tc>, window_params = [{transform_indices = @transform_0, window_bounds = array<i64: 16, 36>}, {pipeline_mode = #tpu.pipeline_mode<synchronous>, transform_indices = @transform_1, window_bounds = array<i64: 36, 128>}, {pipeline_mode = #tpu.pipeline_mode<synchronous>, transform_indices = @transform_2, window_bounds = array<i64: 1, 128>}, {pipeline_mode = #tpu.pipeline_mode<synchronous>, transform_indices = @transform_3, window_bounds = array<i64: 128, 128>}, {pipeline_mode = #tpu.pipeline_mode<synchronous>, transform_indices = @transform_4, window_bounds = array<i64: 1, 128>}, {pipeline_mode = #tpu.pipeline_mode<synchronous>, transform_indices = @transform_5, window_bounds = array<i64: 128, 128>}, {pipeline_mode = #tpu.pipeline_mode<synchronous>, transform_indices = @transform_6, window_bounds = array<i64: 1, 36>}, {transform_indices = @transform_7, window_bounds = array<i64: 16, 36>}]} {
    %c0 = arith.constant 0 : index
    %c0_0 = arith.constant 0 : index
    %0 = vector.load %arg1[%c0, %c0_0] : memref<16x36xf32, #tpu.memory_space<vmem>>, vector<16x36xf32>
    %c0_1 = arith.constant 0 : index
    %c0_2 = arith.constant 0 : index
    %1 = vector.load %arg2[%c0_1, %c0_2] : memref<36x128xf32, #tpu.memory_space<vmem>>, vector<36x128xf32>
    %cst = arith.constant dense<0.000000e+00> : vector<16x128xf32>
    %2 = tpu.matmul %0, %1, %cst {dimension_numbers = #tpu.dot_dimension_numbers<[1], [0], [0], [1], [0, 0, 1, 1], [], []>} : vector<16x36xf32>, vector<36x128xf32>, vector<16x128xf32> -> vector<16x128xf32>
    %c0_3 = arith.constant 0 : index
    %c0_4 = arith.constant 0 : index
    %3 = vector.load %arg3[%c0_3, %c0_4] : memref<1x128xf32, #tpu.memory_space<vmem>>, vector<1x128xf32>
    %4 = vector.broadcast %3 : vector<1x128xf32> to vector<16x128xf32>
    %5 = arith.addf %2, %4 : vector<16x128xf32>
    %cst_5 = arith.constant 0.000000e+00 : f32
    %6 = vector.broadcast %cst_5 : f32 to vector<16x128xf32>
    %7 = arith.cmpf ogt, %5, %6 : vector<16x128xf32>
    %cst_6 = arith.constant 2.000000e-01 : f32
    %8 = vector.broadcast %cst_6 : f32 to vector<16x128xf32>
    %9 = arith.mulf %8, %5 : vector<16x128xf32>
    %10 = arith.select %7, %5, %9 : vector<16x128xi1>, vector<16x128xf32>
    %c0_7 = arith.constant 0 : index
    %c0_8 = arith.constant 0 : index
    %11 = vector.load %arg4[%c0_7, %c0_8] : memref<128x128xf32, #tpu.memory_space<vmem>>, vector<128x128xf32>
    %cst_9 = arith.constant dense<0.000000e+00> : vector<16x128xf32>
    %12 = tpu.matmul %10, %11, %cst_9 {dimension_numbers = #tpu.dot_dimension_numbers<[1], [0], [0], [1], [0, 0, 1, 1], [], []>} : vector<16x128xf32>, vector<128x128xf32>, vector<16x128xf32> -> vector<16x128xf32>
    %c0_10 = arith.constant 0 : index
    %c0_11 = arith.constant 0 : index
    %13 = vector.load %arg5[%c0_10, %c0_11] : memref<1x128xf32, #tpu.memory_space<vmem>>, vector<1x128xf32>
    %14 = vector.broadcast %13 : vector<1x128xf32> to vector<16x128xf32>
    %15 = arith.addf %12, %14 : vector<16x128xf32>
    %cst_12 = arith.constant 0.000000e+00 : f32
    %16 = vector.broadcast %cst_12 : f32 to vector<16x128xf32>
    %17 = arith.cmpf ogt, %15, %16 : vector<16x128xf32>
    %cst_13 = arith.constant 2.000000e-01 : f32
    %18 = vector.broadcast %cst_13 : f32 to vector<16x128xf32>
    %19 = arith.mulf %18, %15 : vector<16x128xf32>
    %20 = arith.select %17, %15, %19 : vector<16x128xi1>, vector<16x128xf32>
    %c0_14 = arith.constant 0 : index
    %c0_15 = arith.constant 0 : index
    %21 = vector.load %arg6[%c0_14, %c0_15] : memref<128x128xf32, #tpu.memory_space<vmem>>, vector<128x128xf32>
    %cst_16 = arith.constant dense<0.000000e+00> : vector<16x128xf32>
    %22 = tpu.matmul %20, %21, %cst_16 {dimension_numbers = #tpu.dot_dimension_numbers<[1], [0], [0], [1], [0, 0, 1, 1], [], []>} : vector<16x128xf32>, vector<128x128xf32>, vector<16x128xf32> -> vector<16x128xf32>
    %23 = vector.extract_strided_slice %22 {offsets = [0, 0], sizes = [16, 36], strides = [1, 1]} : vector<16x128xf32> to vector<16x36xf32>
    %c0_17 = arith.constant 0 : index
    %c0_18 = arith.constant 0 : index
    %24 = vector.load %arg7[%c0_17, %c0_18] : memref<1x36xf32, #tpu.memory_space<vmem>>, vector<1x36xf32>
    %25 = vector.broadcast %24 : vector<1x36xf32> to vector<16x36xf32>
    %26 = arith.addf %23, %25 : vector<16x36xf32>
    %c0_19 = arith.constant 0 : index
    %c0_20 = arith.constant 0 : index
    %27 = vector.load %arg8[%c0_19, %c0_20] : memref<16x36xf32, #tpu.memory_space<vmem>>, vector<16x36xf32>
    tpu.vector_store %arg8[%c0_19, %c0_20], %26 {strides = array<i32>} : memref<16x36xf32, #tpu.memory_space<vmem>>, vector<16x36xf32>,
    return
  }
  func.func @transform_0(%arg0: i32) -> (i32, i32) {
    %c0_i32 = arith.constant 0 : i32
    %c0_i32_0 = arith.constant 0 : i32
    return %arg0, %c0_i32 : i32, i32
  }
  func.func @transform_1(%arg0: i32) -> (i32, i32) {
    %c0_i32 = arith.constant 0 : i32
    %c0_i32_0 = arith.constant 0 : i32
    %c0_i32_1 = arith.constant 0 : i32
    return %c0_i32, %c0_i32_0 : i32, i32
  }
  func.func @transform_2(%arg0: i32) -> (i32, i32) {
    %c0_i32 = arith.constant 0 : i32
    %c0_i32_0 = arith.constant 0 : i32
    %c0_i32_1 = arith.constant 0 : i32
    return %c0_i32, %c0_i32_0 : i32, i32
  }
  func.func @transform_3(%arg0: i32) -> (i32, i32) {
    %c0_i32 = arith.constant 0 : i32
    %c0_i32_0 = arith.constant 0 : i32
    %c0_i32_1 = arith.constant 0 : i32
    return %c0_i32, %c0_i32_0 : i32, i32
  }
  func.func @transform_4(%arg0: i32) -> (i32, i32) {
    %c0_i32 = arith.constant 0 : i32
    %c0_i32_0 = arith.constant 0 : i32
    %c0_i32_1 = arith.constant 0 : i32
    return %c0_i32, %c0_i32_0 : i32, i32
  }
  func.func @transform_5(%arg0: i32) -> (i32, i32) {
    %c0_i32 = arith.constant 0 : i32
    %c0_i32_0 = arith.constant 0 : i32
    %c0_i32_1 = arith.constant 0 : i32
    return %c0_i32, %c0_i32_0 : i32, i32
  }
  func.func @transform_6(%arg0: i32) -> (i32, i32) {
    %c0_i32 = arith.constant 0 : i32
    %c0_i32_0 = arith.constant 0 : i32
    %c0_i32_1 = arith.constant 0 : i32
    return %c0_i32, %c0_i32_0 : i32, i32
  }
  func.func @transform_7(%arg0: i32) -> (i32, i32) {
    %c0_i32 = arith.constant 0 : i32
    %c0_i32_0 = arith.constant 0 : i32
    return %arg0, %c0_i32 : i32, i32
  }
}

</mosaic_0001>

<llo_original>
// kernel: tpu_custom_call.1
$region0: #{tpu_custom_call.1}
  #allocation0 [shape = 'u32[]', space=smem, size = 0x4, offset = 0x4, fixed_abs, tag = 'smem constant byte address 0x4 - core index']
  #allocation1 [shape = 'u32[72,128]{1,0:T(1,128)}', space=vmem, size = 0x9000, scoped, tag = 'internal scratch']
  %s0 = inlined_call_operand.hbm [shape: f32[2,36], index: 0, kind: input, shape index: {}]
  %s1 = inlined_call_operand.hbm [shape: f32[36,128], index: 1, kind: input, shape index: {}]
  %s2 = inlined_call_operand.vmem [shape: f32[1,128], index: 2, kind: input, shape index: {}]
  %s3 = inlined_call_operand.hbm [shape: f32[128,128], index: 3, kind: input, shape index: {}]
  %s4 = inlined_call_operand.vmem [shape: f32[1,128], index: 4, kind: input, shape index: {}]
  %s5 = inlined_call_operand.hbm [shape: f32[128,128], index: 5, kind: input, shape index: {}]
  %s6 = inlined_call_operand.vmem [shape: f32[1,36], index: 6, kind: input, shape index: {}]
  %s7 = inlined_call_operand.hbm [shape: f32[2,36], index: 7, kind: output, shape index: {}]
  %s8 = sld [smem:[#allocation0]]
  $region54: #{tpu_custom_call.1} parent=0
    _
  %s10 = ssub.s32 1, %s8
  %s11 = scalar_select 0, %s10, %s8
  $region1: #{tpu_custom_call.1} parent=0
    #allocation2 [shape = 'u8[8192]{0}', space=vmem, size = 0x2000, scoped, tag = 'input window, operand 0, single buffered']
    #allocation3 [shape = 's32[1]{0}', space=sflag, size = 0x4, scoped, tag = 'scoped memory for tpu_custom_call.1']
    #allocation4 [shape = 's32[1]{0}', space=sflag, size = 0x4, scoped, tag = 'scoped memory for tpu_custom_call.1']
    #allocation5 [shape = 'u8[20480]{0}', space=vmem, size = 0x5000, scoped, tag = 'input window, operand 1, single buffered']
    #allocation6 [shape = 's32[1]{0}', space=sflag, size = 0x4, scoped, tag = 'scoped memory for tpu_custom_call.1']
    #allocation7 [shape = 'u8[65536]{0}', space=vmem, size = 0x10000, scoped, tag = 'input window, operand 3, single buffered']
    #allocation8 [shape = 'u8[65536]{0}', space=vmem, size = 0x10000, scoped, tag = 'input window, operand 5, single buffered']
    #allocation9 [shape = 's32[1]{0}', space=sflag, size = 0x4, scoped, tag = 'scoped memory for tpu_custom_call.1']
    #allocation10 [shape = 'u8[8192]{0}', space=vmem, size = 0x2000, scoped, tag = 'output window, operand 0, single buffered']
    %12 = vsyncpa [#allocation3], 0
    %13 = vsyncpa [#allocation6], 0
    %14 = vsyncpa [#allocation9], 0
    %15 = vsyncpa [#allocation4], 0
    // Predicated region
    $region2: #{tpu_custom_call.1} parent=1 // pred_check
      _
    $region3: #{tpu_custom_call.1} parent=1 // pred_check_branch
      %17 = sbr.rel (0) target = $region5
    $region4: #{tpu_custom_call.1} parent=1 // pred_region
      %19 = vsyncadd [#allocation3], 224
      %s20 = sshll.u32 %s0, 4
      %s21 = int_to_ptr.hbm [resolvable:$true] %s20
      %s22 = sshll.u32 [#allocation2], 4
      %s23 = int_to_ptr.vmem [resolvable:$true] %s22
      %28 = dma.hbm_to_vmem [thread:$0]  %s21, 32, %s23, [#allocation3], 32, 32, 2
    $region5: #{tpu_custom_call.1} parent=1 // pred_fallthru
      _
    // Predicated region
    $region6: #{tpu_custom_call.1} parent=1 // pred_check
      _
    $region7: #{tpu_custom_call.1} parent=1 // pred_check_branch
      %30 = sbr.rel (0) target = $region9
    $region8: #{tpu_custom_call.1} parent=1 // pred_region
      %32 = vsyncadd [#allocation6], 0
      %s33 = sshll.u32 %s1, 4
      %s34 = int_to_ptr.hbm [resolvable:$true] %s33
      %s35 = sshll.u32 [#allocation5], 4
      %s36 = int_to_ptr.vmem [resolvable:$true] %s35
      %41 = dma.hbm_to_vmem [thread:$0]  %s34, 640, %s36, [#allocation6], 128, 128, 8
    $region9: #{tpu_custom_call.1} parent=1 // pred_fallthru
      _
    // Predicated region
    $region10: #{tpu_custom_call.1} parent=1 // pred_check
      _
    $region11: #{tpu_custom_call.1} parent=1 // pred_check_branch
      %43 = sbr.rel (0) target = $region13
    $region12: #{tpu_custom_call.1} parent=1 // pred_region
      _
    $region13: #{tpu_custom_call.1} parent=1 // pred_fallthru
      _
    // Predicated region
    $region14: #{tpu_custom_call.1} parent=1 // pred_check
      _
    $region15: #{tpu_custom_call.1} parent=1 // pred_check_branch
      %45 = sbr.rel (0) target = $region17
    $region16: #{tpu_custom_call.1} parent=1 // pred_region
      %47 = vsyncadd [#allocation6], 0
      %s48 = sshll.u32 %s3, 4
      %s49 = int_to_ptr.hbm [resolvable:$true] %s48
      %s50 = sshll.u32 [#allocation7], 4
      %s51 = int_to_ptr.vmem [resolvable:$true] %s50
      %56 = dma.hbm_to_vmem [thread:$0]  %s49, 2048, %s51, [#allocation6], 128, 128, 8
    $region17: #{tpu_custom_call.1} parent=1 // pred_fallthru
      _
    // Predicated region
    $region18: #{tpu_custom_call.1} parent=1 // pred_check
      _
    $region19: #{tpu_custom_call.1} parent=1 // pred_check_branch
      %58 = sbr.rel (0) target = $region21
    $region20: #{tpu_custom_call.1} parent=1 // pred_region
      _
    $region21: #{tpu_custom_call.1} parent=1 // pred_fallthru
      _
    // Predicated region
    $region22: #{tpu_custom_call.1} parent=1 // pred_check
      _
    $region23: #{tpu_custom_call.1} parent=1 // pred_check_branch
      %60 = sbr.rel (0) target = $region25
    $region24: #{tpu_custom_call.1} parent=1 // pred_region
      %62 = vsyncadd [#allocation9], 0
      %s63 = sshll.u32 %s5, 4
      %s64 = int_to_ptr.hbm [resolvable:$true] %s63
      %s65 = sshll.u32 [#allocation8], 4
      %s66 = int_to_ptr.vmem [resolvable:$true] %s65
      %71 = dma.hbm_to_vmem [thread:$0]  %s64, 2048, %s66, [#allocation9], 128, 128, 8
    $region25: #{tpu_custom_call.1} parent=1 // pred_fallthru
      _
    // Predicated region
    $region26: #{tpu_custom_call.1} parent=1 // pred_check
      _
    $region27: #{tpu_custom_call.1} parent=1 // pred_check_branch
      %73 = sbr.rel (0) target = $region29
    $region28: #{tpu_custom_call.1} parent=1 // pred_region
      _
    $region29: #{tpu_custom_call.1} parent=1 // pred_fallthru
      _
    // Predicated region
    $region30: #{tpu_custom_call.1} parent=1 // pred_check
      _
    $region31: #{tpu_custom_call.1} parent=1 // pred_check_branch
      %75 = sbr.rel (0) target = $region33
    $region32: #{tpu_custom_call.1} parent=1 // pred_region
      %77 = dma.done [#allocation3], 256
    $region33: #{tpu_custom_call.1} parent=1 // pred_fallthru
      _
    // Predicated region
    $region34: #{tpu_custom_call.1} parent=1 // pred_check
      _
    $region35: #{tpu_custom_call.1} parent=1 // pred_check_branch
      %79 = sbr.rel (0) target = $region37
    $region36: #{tpu_custom_call.1} parent=1 // pred_region
      %81 = dma.done [#allocation6], 640
    $region37: #{tpu_custom_call.1} parent=1 // pred_fallthru
      _
    // Predicated region
    $region38: #{tpu_custom_call.1} parent=1 // pred_check
      _
    $region39: #{tpu_custom_call.1} parent=1 // pred_check_branch
      %83 = sbr.rel (0) target = $region41
    $region40: #{tpu_custom_call.1} parent=1 // pred_region
      %85 = dma.done [#allocation6], 2048
    $region41: #{tpu_custom_call.1} parent=1 // pred_fallthru
      _
    // Predicated region
    $region42: #{tpu_custom_call.1} parent=1 // pred_check
      _
    $region43: #{tpu_custom_call.1} parent=1 // pred_check_branch
      %87 = sbr.rel (0) target = $region45
    $region44: #{tpu_custom_call.1} parent=1 // pred_region
      %89 = dma.done [#allocation9], 2048
    $region45: #{tpu_custom_call.1} parent=1 // pred_fallthru
      _
    %v90 = vld [vmem:[#allocation2] sm:$0xff]
    %v91 = vld [vmem:[#allocation2 + $0x8] sm:$0xff]
    %v92 = vld [vmem:[#allocation5] sm:$0xff]
    %v93 = vld [vmem:[#allocation5 + $0x8] sm:$0xff]
    %v94 = vld [vmem:[#allocation5 + $0x10] sm:$0xff]
    %v95 = vld [vmem:[#allocation5 + $0x18] sm:$0xff]
    %v96 = vld [vmem:[#allocation5 + $0x20] sm:$0xf]
    %v97 = vld [vmem:[%s2] sm:$0x1]
    %v99 = vperm.slane %v97, 0
    %vm101 = vcmask 293888
    %v103 = vsel %vm101, %v90, 0
    %v106 = vsel %vm101, %v91, 0
    %vm108 = vcmask 1043456
    %v110 = vsel %vm108, %v96, 0
    %112 = vmatpush.msra.mxu0 0.0
    %113 = vmatpush.msra.mxu0 0.0
    %114 = vmatpush.msra.mxu0 0.0
    %115 = vmatpush.msra.mxu0 0.0
    %116 = vmatpush.msra.mxu0 0.0
    %117 = vmatpush.msra.mxu0 0.0
    %118 = vmatpush.msra.mxu0 0.0
    %119 = vmatpush.msra.mxu0 0.0
    %120 = vmatpush.msra.mxu0 0.0
    %121 = vmatpush.msra.mxu0 0.0
    %122 = vmatpush.msra.mxu0 0.0
    %123 = vmatpush.msra.mxu0 %v110
    %124 = vmatpush.msra.mxu0 %v95
    %125 = vmatpush.msra.mxu0 %v94
    %126 = vmatpush.msra.mxu0 %v93
    %127 = vmatpush.msra.mxu0 %v92
    %128 = vmatmul.f32.gmra.mxu0 %v103
    %v129 = vpop.f32.mrf.mxu0
    %v130 = vadd.f32 %v99, %v129
    %131 = vmatmul.f32.gmra.mxu0 %v106
    %v132 = vpop.f32.mrf.mxu0
    %v133 = vadd.f32 %v99, %v132
    %134 = vdwg.mxu0
    %vm135 = vcmp.gt.f32.partialorder %v130, 0.0
    %vm136 = vcmp.gt.f32.partialorder %v133, 0.0
    %v137 = vmul.f32 %v130, 0.2
    %v138 = vmul.f32 %v133, 0.2
    %v139 = vsel %vm135, %v130, %v137
    %v140 = vsel %vm136, %v133, %v138
    %v141 = vld [vmem:[#allocation7] sm:$0xff]
    %v142 = vld [vmem:[#allocation7 + $0x8] sm:$0xff]
    %v143 = vld [vmem:[#allocation7 + $0x10] sm:$0xff]
    %v144 = vld [vmem:[#allocation7 + $0x18] sm:$0xff]
    %v145 = vld [vmem:[#allocation7 + $0x20] sm:$0xff]
    %v146 = vld [vmem:[#allocation7 + $0x28] sm:$0xff]
    %v147 = vld [vmem:[#allocation7 + $0x30] sm:$0xff]
    %v148 = vld [vmem:[#allocation7 + $0x38] sm:$0xff]
    %v149 = vld [vmem:[#allocation7 + $0x40] sm:$0xff]
    %v150 = vld [vmem:[#allocation7 + $0x48] sm:$0xff]
    %v151 = vld [vmem:[#allocation7 + $0x50] sm:$0xff]
    %v152 = vld [vmem:[#allocation7 + $0x58] sm:$0xff]
    %v153 = vld [vmem:[#allocation7 + $0x60] sm:$0xff]
    %v154 = vld [vmem:[#allocation7 + $0x68] sm:$0xff]
    %v155 = vld [vmem:[#allocation7 + $0x70] sm:$0xff]
    %v156 = vld [vmem:[#allocation7 + $0x78] sm:$0xff]
    %v157 = vld [vmem:[%s4] sm:$0x1]
    %v159 = vperm.slane %v157, 0
    %161 = vmatpush.msra.mxu0 %v156
    %162 = vmatpush.msra.mxu0 %v155
    %163 = vmatpush.msra.mxu0 %v154
    %164 = vmatpush.msra.mxu0 %v153
    %165 = vmatpush.msra.mxu0 %v152
    %166 = vmatpush.msra.mxu0 %v151
    %167 = vmatpush.msra.mxu0 %v150
    %168 = vmatpush.msra.mxu0 %v149
    %169 = vmatpush.msra.mxu0 %v148
    %170 = vmatpush.msra.mxu0 %v147
    %171 = vmatpush.msra.mxu0 %v146
    %172 = vmatpush.msra.mxu0 %v145
    %173 = vmatpush.msra.mxu0 %v144
    %174 = vmatpush.msra.mxu0 %v143
    %175 = vmatpush.msra.mxu0 %v142
    %176 = vmatpush.msra.mxu0 %v141
    %177 = vmatmul.f32.gmra.mxu0 %v139
    %v178 = vpop.f32.mrf.mxu0
    %v179 = vadd.f32 %v159, %v178
    %180 = vmatmul.f32.gmra.mxu0 %v140
    %v181 = vpop.f32.mrf.mxu0
    %v182 = vadd.f32 %v159, %v181
    %183 = vdwg.mxu0
    %vm184 = vcmp.gt.f32.partialorder %v179, 0.0
    %vm185 = vcmp.gt.f32.partialorder %v182, 0.0
    %v186 = vmul.f32 %v179, 0.2
    %v187 = vmul.f32 %v182, 0.2
    %v188 = vsel %vm184, %v179, %v186
    %v189 = vsel %vm185, %v182, %v187
    %v190 = vld [vmem:[#allocation8] sm:$0xff]
    %v191 = vld [vmem:[#allocation8 + $0x8] sm:$0xff]
    %v192 = vld [vmem:[#allocation8 + $0x10] sm:$0xff]
    %v193 = vld [vmem:[#allocation8 + $0x18] sm:$0xff]
    %v194 = vld [vmem:[#allocation8 + $0x20] sm:$0xff]
    %v195 = vld [vmem:[#allocation8 + $0x28] sm:$0xff]
    %v196 = vld [vmem:[#allocation8 + $0x30] sm:$0xff]
    %v197 = vld [vmem:[#allocation8 + $0x38] sm:$0xff]
    %v198 = vld [vmem:[#allocation8 + $0x40] sm:$0xff]
    %v199 = vld [vmem:[#allocation8 + $0x48] sm:$0xff]
    %v200 = vld [vmem:[#allocation8 + $0x50] sm:$0xff]
    %v201 = vld [vmem:[#allocation8 + $0x58] sm:$0xff]
    %v202 = vld [vmem:[#allocation8 + $0x60] sm:$0xff]
    %v203 = vld [vmem:[#allocation8 + $0x68] sm:$0xff]
    %v204 = vld [vmem:[#allocation8 + $0x70] sm:$0xff]
    %v205 = vld [vmem:[#allocation8 + $0x78] sm:$0xff]
    %206 = vmatpush.msra.mxu0 %v205
    %207 = vmatpush.msra.mxu0 %v204
    %208 = vmatpush.msra.mxu0 %v203
    %209 = vmatpush.msra.mxu0 %v202
    %210 = vmatpush.msra.mxu0 %v201
    %211 = vmatpush.msra.mxu0 %v200
    %212 = vmatpush.msra.mxu0 %v199
    %213 = vmatpush.msra.mxu0 %v198
    %214 = vmatpush.msra.mxu0 %v197
    %215 = vmatpush.msra.mxu0 %v196
    %216 = vmatpush.msra.mxu0 %v195
    %217 = vmatpush.msra.mxu0 %v194
    %218 = vmatpush.msra.mxu0 %v193
    %219 = vmatpush.msra.mxu0 %v192
    %220 = vmatpush.msra.mxu0 %v191
    %221 = vmatpush.msra.mxu0 %v190
    %222 = vmatmul.f32.gmra.mxu0 %v188
    %v223 = vpop.f32.mrf.mxu0
    %v224 = vadd.f32 0.0, %v223
    %225 = vmatmul.f32.gmra.mxu0 %v189
    %v226 = vpop.f32.mrf.mxu0
    %v227 = vadd.f32 0.0, %v226
    %228 = vdwg.mxu0
    %v229 = vld [vmem:[%s6] sm:$0x1]
    %v231 = vperm.slane %v229, 0
    %v233 = vadd.f32 %v224, %v231
    %v234 = vadd.f32 %v227, %v231
    %235 = vst.msk [vmem:[#allocation10] sm:$0xff] %vm101, %v233
    %236 = vst.msk [vmem:[#allocation10 + $0x8] sm:$0xff] %vm101, %v234
    // Predicated region
    $region46: #{tpu_custom_call.1} parent=1 // pred_check
      _
    $region47: #{tpu_custom_call.1} parent=1 // pred_check_branch
      %238 = sbr.rel (0) target = $region49
    $region48: #{tpu_custom_call.1} parent=1 // pred_region
      %240 = vsyncadd [#allocation4], 224
      %s241 = sshll.u32 [#allocation10], 4
      %s242 = int_to_ptr.vmem [resolvable:$true] %s241
      %s243 = sshll.u32 %s7, 4
      %s244 = int_to_ptr.hbm [resolvable:$true] %s243
      %249 = dma.vmem_to_hbm [thread:$0]  %s242, 32, %s244, [#allocation4], 32, 32, 2
    $region49: #{tpu_custom_call.1} parent=1 // pred_fallthru
      _
    // Predicated region
    $region50: #{tpu_custom_call.1} parent=1 // pred_check
      _
    $region51: #{tpu_custom_call.1} parent=1 // pred_check_branch
      %251 = sbr.rel (0) target = $region53
    $region52: #{tpu_custom_call.1} parent=1 // pred_region
      %253 = dma.done [#allocation4], 256
    $region53: #{tpu_custom_call.1} parent=1 // pred_fallthru
      _
    %254 = vsyncpa [#allocation3], 1
    %255 = vsyncpa [#allocation6], 1
    %256 = vsyncpa [#allocation9], 1
    %257 = vsyncpa [#allocation4], 1

</llo_original>
